<compile_context>
chip_gen: v6e
topology: v6e:2x2x1
jax: 0.10.0
libtpu: 0.0.40
codegen_flags: <defaults>
</compile_context>

<pallas_src>
import functools

import jax
import jax.numpy as jnp
from jax import lax
from jax.experimental import pallas as pl
from jax.experimental.pallas import tpu as pltpu


def _onehot_gather_kernel(idx_ref, x_ref, o_ref, *, precision):
    """Gather kept tokens for a block of batch rows via a one-hot MXU matmul.

    idx_ref: VMEM (TB, K, 1) int32 -- kept token index into the seq axis.
    x_ref:   VMEM (TB, S, TD)      -- full token sequence (one D tile).
    o_ref:   VMEM (TB, K, TD)      -- gathered (kept) tokens.
    """
    tb, k, _ = idx_ref.shape
    s = x_ref.shape[1]
    # onehot[b, k, s] = 1.0 iff idx[b, k] == s   (VPU compare + select).
    iota_s = lax.broadcasted_iota(jnp.int32, (tb, k, s), dimension=2)
    onehot = jnp.where(iota_s == idx_ref[...], 1.0, 0.0).astype(x_ref.dtype)
    # Row selection on the MXU; each output row is 1.0 * x[src] + zeros with f32
    # accumulation -> exact for bf16 token values (f32 inputs use HIGHEST passes).
    gathered = jnp.einsum(
        "bks,bsd->bkd", onehot, x_ref[...],
        preferred_element_type=jnp.float32, precision=precision)
    o_ref[...] = gathered.astype(o_ref.dtype)


def _pick_d_tile(d):
    """Largest lane-dense (multiple-of-128) divisor of d that is <= 512, else d."""
    if d <= 512:
        return d
    for t in (512, 384, 256, 128):
        if d % t == 0:
            return t
    return d


def _pick_b_tile(b, s, td, itemsize, budget_bytes=4 * 1024 * 1024):
    """Largest divisor of b <= 8 whose (tb, S, TD) input block fits the budget."""
    for t in range(min(b, 8), 0, -1):
        if b % t == 0 and t * s * td * itemsize <= budget_bytes:
            return t
    return 1


def patch_dropout(x, key, prob, exclude_first_token=True, training=True):
    """JAX/Pallas equivalent of PatchDropout.forward.

    `training` and `prob` must be static Python values (the early-out is a
    Python-level branch, exactly like the PyTorch module).
    """
    if not training or prob == 0.0:
        return x
    assert 0.0 <= prob < 1.0

    B, S, D = x.shape
    if exclude_first_token:
        num_tokens, offset = S - 1, 1
    else:
        num_tokens, offset = S, 0

    keep_prob = 1.0 - prob
    num_patches_keep = max(1, int(num_tokens * keep_prob))

    # RNG + top-k selection (same semantics as torch.randn(...).topk(...).indices);
    # tiny (B, num_tokens) tensor -> plain JAX glue (distributional parity only).
    rand = jax.random.normal(key, (B, num_tokens), dtype=jnp.float32)
    _, patch_idx = lax.top_k(rand, num_patches_keep)            # (B, K_patch)
    patch_idx = patch_idx.astype(jnp.int32) + offset            # skip cls slot

    if exclude_first_token:
        cls_idx = jnp.zeros((B, 1), dtype=jnp.int32)            # always keep token 0
        gather_idx = jnp.concatenate([cls_idx, patch_idx], axis=1)
    else:
        gather_idx = patch_idx
    n_keep = gather_idx.shape[1]
    idx3 = gather_idx[:, :, None]                               # (B, K, 1) for VMEM

    itemsize = jnp.dtype(x.dtype).itemsize
    td = _pick_d_tile(D)
    tb = _pick_b_tile(B, S, td, itemsize)
    grid = (B // tb, D // td)

    # VMEM budget: double-buffered in/out/idx blocks + one-hot/iota temporaries.
    x_blk = tb * S * td * itemsize
    o_blk = tb * n_keep * td * itemsize
    i_blk = tb * max(n_keep, 8) * 128 * 4          # (TB, K, 1) int32, lane-padded
    tmp = tb * n_keep * S * 4                      # iota / one-hot f32 temporaries
    need = 2 * (x_blk + o_blk + i_blk) + 2 * tmp + (4 << 20)
    vmem_limit = int(min(max(need, 32 << 20), 64 << 20))

    # Exact f32 selection needs full-precision MXU passes; bf16 is exact natively.
    precision = lax.Precision.HIGHEST if x.dtype == jnp.float32 else None
    kernel = functools.partial(_onehot_gather_kernel, precision=precision)

    # TODO(synk): for very high drop rates (prob >= ~0.75, large D) a manual
    # per-token DMA gather (memory_space=pl.ANY + make_async_copy) would skip
    # reading dropped tokens from HBM entirely.
    out = pl.pallas_call(
        kernel,
        out_shape=jax.ShapeDtypeStruct((B, n_keep, D), x.dtype),
        grid=grid,
        in_specs=[
            pl.BlockSpec((tb, n_keep, 1), lambda b, d: (b, 0, 0)),
            pl.BlockSpec((tb, S, td), lambda b, d: (b, 0, d)),
        ],
        out_specs=pl.BlockSpec((tb, n_keep, td), lambda b, d: (b, 0, d)),
        compiler_params=pltpu.CompilerParams(
            dimension_semantics=("parallel", "parallel"),
            vmem_limit_bytes=vmem_limit,
        ),
    )(idx3, x)
    return out


if __name__ == "__main__":
    key = jax.random.PRNGKey(0)
    k_x, k_drop = jax.random.split(key)

    B, S, D = 2, 17, 32            # 1 cls token + 16 patch tokens, hidden = 32
    prob = 0.5                     # PatchDropout(prob=0.5, exclude_first_token=True)
    x = jax.random.normal(k_x, (B, S, D), dtype=jnp.bfloat16)

    out = patch_dropout(x, k_drop, prob, exclude_first_token=True, training=True)
    out = jax.block_until_ready(out)

    # Pure-JAX reference (same RNG draw + top_k + gather + cls concat).
    num_tokens = S - 1
    k = max(1, int(num_tokens * (1.0 - prob)))
    rand = jax.random.normal(k_drop, (B, num_tokens), dtype=jnp.float32)
    _, idx = lax.top_k(rand, k)
    ref = jnp.concatenate(
        [x[:, :1], jnp.take_along_axis(x[:, 1:], idx[..., None], axis=1)], axis=1)

    assert out.shape == (B, 1 + k, D), out.shape
    # bf16 selection via the one-hot MXU matmul is exact; the loose tolerance only
    # guards against exotic rounding while still catching any wrong-token gather
    # (a wrong row differs by O(1)).
    diff = jnp.max(jnp.abs(out.astype(jnp.float32) - ref.astype(jnp.float32)))
    assert float(diff) <= 1e-2, f"Pallas gather mismatch vs JAX reference: {diff}"
    print("KERNEL_OK")
</pallas_src>

<mosaic_0001>
module attributes {stable_mosaic.version = 11 : i64} {
  func.func @_onehot_gather_kernel(%arg0: i32, %arg1: i32, %arg2: memref<2x9x1xi32, #tpu.memory_space<vmem>>, %arg3: memref<2x17x32xbf16, #tpu.memory_space<vmem>>, %arg4: memref<2x9x32xbf16, #tpu.memory_space<vmem>>) attributes {dimension_semantics = [#tpu.dimension_semantics<parallel>, #tpu.dimension_semantics<parallel>], iteration_bounds = array<i64: 1, 1>, scalar_prefetch = 0 : i64, scratch_operands = 0 : i64, tpu.core_type = #tpu.core_type<tc>, window_params = [{transform_indices = @transform_0, window_bounds = array<i64: 2, 9, 1>}, {transform_indices = @transform_1, window_bounds = array<i64: 2, 17, 32>}, {transform_indices = @transform_2, window_bounds = array<i64: 2, 9, 32>}]} {
    %0 = tpu.iota {dimensions = array<i32: 2>} : vector<2x9x17xi32>
    %c0 = arith.constant 0 : index
    %c0_0 = arith.constant 0 : index
    %c0_1 = arith.constant 0 : index
    %1 = vector.load %arg2[%c0, %c0_0, %c0_1] : memref<2x9x1xi32, #tpu.memory_space<vmem>>, vector<2x9x1xi32>
    %2 = vector.broadcast %1 : vector<2x9x1xi32> to vector<2x9x17xi32>
    %3 = arith.cmpi eq, %0, %2 : vector<2x9x17xi32>
    %cst = arith.constant 1.000000e+00 : f32
    %cst_2 = arith.constant 0.000000e+00 : f32
    %4 = vector.broadcast %cst : f32 to vector<2x9x17xf32>
    %5 = vector.broadcast %cst_2 : f32 to vector<2x9x17xf32>
    %6 = arith.select %3, %4, %5 : vector<2x9x17xi1>, vector<2x9x17xf32>
    %7 = arith.truncf %6 : vector<2x9x17xf32> to vector<2x9x17xbf16>
    %c0_3 = arith.constant 0 : index
    %c0_4 = arith.constant 0 : index
    %c0_5 = arith.constant 0 : index
    %8 = vector.load %arg3[%c0_3, %c0_4, %c0_5] : memref<2x17x32xbf16, #tpu.memory_space<vmem>>, vector<2x17x32xbf16>
    "tpu.trace_start"() <{level = 10 : i32, message = "bks,bsd->bkd"}> : () -> ()
    %cst_6 = arith.constant dense<0.000000e+00> : vector<2x9x32xf32>
    %9 = tpu.matmul %7, %8, %cst_6 {dimension_numbers = #tpu.dot_dimension_numbers<[2], [1], [1], [2], [0, 0, 0, 1, 1, 2], [0], [0]>} : vector<2x9x17xbf16>, vector<2x17x32xbf16>, vector<2x9x32xf32> -> vector<2x9x32xf32>
    "tpu.trace_stop"() : () -> ()
    %10 = arith.truncf %9 : vector<2x9x32xf32> to vector<2x9x32xbf16>
    %c0_7 = arith.constant 0 : index
    %c0_8 = arith.constant 0 : index
    %c0_9 = arith.constant 0 : index
    %11 = vector.load %arg4[%c0_7, %c0_8, %c0_9] : memref<2x9x32xbf16, #tpu.memory_space<vmem>>, vector<2x9x32xbf16>
    tpu.vector_store %arg4[%c0_7, %c0_8, %c0_9], %10 {strides = array<i32>} : memref<2x9x32xbf16, #tpu.memory_space<vmem>>, vector<2x9x32xbf16>,
    return
  }
  func.func @transform_0(%arg0: i32, %arg1: i32) -> (i32, i32, i32) {
    %c0_i32 = arith.constant 0 : i32
    %c0_i32_0 = arith.constant 0 : i32
    %c0_i32_1 = arith.constant 0 : i32
    return %arg0, %c0_i32, %c0_i32_0 : i32, i32, i32
  }
  func.func @transform_1(%arg0: i32, %arg1: i32) -> (i32, i32, i32) {
    %c0_i32 = arith.constant 0 : i32
    %c0_i32_0 = arith.constant 0 : i32
    return %arg0, %c0_i32, %arg1 : i32, i32, i32
  }
  func.func @transform_2(%arg0: i32, %arg1: i32) -> (i32, i32, i32) {
    %c0_i32 = arith.constant 0 : i32
    %c0_i32_0 = arith.constant 0 : i32
    return %arg0, %c0_i32, %arg1 : i32, i32, i32
  }
}

</mosaic_0001>

<llo_original>
// kernel: tpu_custom_call.1
$region0: #{tpu_custom_call.1}
  #allocation0 [shape = 'u32[]', space=smem, size = 0x4, offset = 0x4, fixed_abs, tag = 'smem constant byte address 0x4 - core index']
  #allocation1 [shape = 'u32[144,128]{1,0:T(1,128)}', space=vmem, size = 0x12000, scoped, tag = 'internal scratch']
  %s0 = inlined_call_operand.vmem [shape: s32[2,9,1], index: 0, kind: input, shape index: {}]
  %s1 = inlined_call_operand.vmem [shape: bf16[2,17,32], index: 1, kind: input, shape index: {}]
  %s2 = inlined_call_operand.vmem [shape: bf16[2,9,32], index: 2, kind: output, shape index: {}]
  %s3 = sld [smem:[#allocation0]]
  $region18: #{tpu_custom_call.1} parent=0
    _
  %s5 = ssub.s32 1, %s3
  %s6 = scalar_select 0, %s5, %s3
  // Predicated region
  $region2: #{tpu_custom_call.1} parent=0 // pred_check
    _
  $region3: #{tpu_custom_call.1} parent=0 // pred_check_branch
    %8 = sbr.rel (0) target = $region5
  $region4: #{tpu_custom_call.1} parent=0 // pred_region
    _
  $region5: #{tpu_custom_call.1} parent=0 // pred_fallthru
    _
  // Predicated region
  $region6: #{tpu_custom_call.1} parent=0 // pred_check
    _
  $region7: #{tpu_custom_call.1} parent=0 // pred_check_branch
    %10 = sbr.rel (0) target = $region9
  $region8: #{tpu_custom_call.1} parent=0 // pred_region
    _
  $region9: #{tpu_custom_call.1} parent=0 // pred_fallthru
    _
  %v12 = vlaneseq
  %v13 = vand.u32 %v12, 127
  %v14 = vld [vmem:[%s0] sm:$0xff]
  %v15 = vld [vmem:[%s0 + $0x8] sm:$0x1]
  %v16 = vld [vmem:[%s0 + $0x10] sm:$0xff]
  %v17 = vld [vmem:[%s0 + $0x18] sm:$0x1]
  %18 = vset.pattern.permute.xlu0 0
  %19 = vperm.xlu0 %18, %v14
  %v20 = vpop.permute.xlu0 %19
  %21 = vset.pattern.permute.xlu0 0
  %22 = vperm.xlu0 %21, %v15
  %v23 = vpop.permute.xlu0 %22
  %24 = vset.pattern.permute.xlu0 0
  %25 = vperm.xlu0 %24, %v16
  %v26 = vpop.permute.xlu0 %25
  %27 = vset.pattern.permute.xlu0 0
  %28 = vperm.xlu0 %27, %v17
  %v29 = vpop.permute.xlu0 %28
  %vm30 = vcmp.eq.s32.totalorder %v13, %v20
  %vm31 = vcmp.eq.s32.totalorder %v13, %v23
  %vm32 = vcmp.eq.s32.totalorder %v13, %v26
  %vm33 = vcmp.eq.s32.totalorder %v13, %v29
  %v34 = vsel %vm30, 1.0, 0.0
  %v35 = vsel %vm31, 1.0, 0.0
  %v36 = vsel %vm32, 1.0, 0.0
  %v37 = vsel %vm33, 1.0, 0.0
  %v38 = vpack.c.bf16 %v35, %v34
  %v39 = vpack.c.bf16 %v37, %v36
  %v40 = vld [vmem:[%s1] sm:$0xf]
  %v41 = vld [vmem:[%s1 + $0x4] sm:$0xf]
  %v42 = vld [vmem:[%s1 + $0x8] sm:$0x1]
  %v43 = vld [vmem:[%s1 + $0xc] sm:$0xf]
  %v44 = vld [vmem:[%s1 + $0x10] sm:$0xf]
  %v45 = vld [vmem:[%s1 + $0x14] sm:$0x1]
  %v49 = vunpack.c.l.b16 %v40
  %v50 = vunpack.c.l.b16 %v41
  %v51 = vunpack.c.l.b16 %v42
  %v52 = vpack.c.b16 %v50, %v49
  %v53 = vpack.c.b16 %v51, %v51
  %vm55 = vcmask 138240
  %v57 = vsel %vm55, %v38, 0
  %vm59 = vcmask 1040384
  %v60 = vsel 0, 4294967295, 65535
  %v61 = vsel %vm59, %v60, 0
  %v63 = vand.u32 %v53, %v61
  %65 = vmatprep.subr.bf16.mxu0 0
  %66 = vmatpush1.bf16.msra.mxu0 0
  %67 = vmatprep.subr.bf16.mxu0 0
  %68 = vmatpush1.bf16.msra.mxu0 0
  %69 = vmatprep.subr.bf16.mxu0 0
  %70 = vmatpush1.bf16.msra.mxu0 0
  %71 = vmatprep.subr.bf16.mxu0 0
  %72 = vmatpush1.bf16.msra.mxu0 0
  %73 = vmatprep.subr.bf16.mxu0 0
  %74 = vmatpush1.bf16.msra.mxu0 0
  %75 = vmatprep.subr.bf16.mxu0 0
  %76 = vmatpush1.bf16.msra.mxu0 0
  %77 = vmatprep.subr.bf16.mxu0 0
  %78 = vmatpush1.bf16.msra.mxu0 %v63
  %79 = vmatprep.subr.bf16.mxu0 0
  %80 = vmatpush1.bf16.msra.mxu0 %v52
  %81 = vmatprep.subr.bf16.mxu0 0
  %82 = vmatpush2.bf16.msra.mxu0 0
  %83 = vmatprep.subr.bf16.mxu0 0
  %84 = vmatpush2.bf16.msra.mxu0 0
  %85 = vmatprep.subr.bf16.mxu0 0
  %86 = vmatpush2.bf16.msra.mxu0 0
  %87 = vmatprep.subr.bf16.mxu0 0
  %88 = vmatpush2.bf16.msra.mxu0 0
  %89 = vmatprep.subr.bf16.mxu0 0
  %90 = vmatpush2.bf16.msra.mxu0 0
  %91 = vmatprep.subr.bf16.mxu0 0
  %92 = vmatpush2.bf16.msra.mxu0 0
  %93 = vmatprep.subr.bf16.mxu0 0
  %94 = vmatpush2.bf16.msra.mxu0 0
  %95 = vmatprep.subr.bf16.mxu0 0
  %96 = vmatpush2.bf16.msra.mxu0 0
  %97 = vmatprep.mubr.bf16.mxu0 0
  %98 = vmatmul.mubr.bf16.gmra.mxu0 %v57
  %v99 = vpop.f32.mrf.mxu0
  %v100 = vadd.f32 0.0, %v99
  %v101 = vpop.f32.mrf.mxu0
  %v102 = vpop.f32.mrf.mxu0
  %v103 = vadd.f32 0.0, %v102
  %v104 = vpop.f32.mrf.mxu0
  %105 = vdwg.mxu0
  %v109 = vunpack.c.l.b16 %v43
  %v110 = vunpack.c.l.b16 %v44
  %v111 = vunpack.c.l.b16 %v45
  %v112 = vpack.c.b16 %v110, %v109
  %v113 = vpack.c.b16 %v111, %v111
  %v116 = vsel %vm55, %v39, 0
  %v119 = vand.u32 %v113, %v61
  %121 = vmatprep.subr.bf16.mxu0 0
  %122 = vmatpush1.bf16.msra.mxu0 0
  %123 = vmatprep.subr.bf16.mxu0 0
  %124 = vmatpush1.bf16.msra.mxu0 0
  %125 = vmatprep.subr.bf16.mxu0 0
  %126 = vmatpush1.bf16.msra.mxu0 0
  %127 = vmatprep.subr.bf16.mxu0 0
  %128 = vmatpush1.bf16.msra.mxu0 0
  %129 = vmatprep.subr.bf16.mxu0 0
  %130 = vmatpush1.bf16.msra.mxu0 0
  %131 = vmatprep.subr.bf16.mxu0 0
  %132 = vmatpush1.bf16.msra.mxu0 0
  %133 = vmatprep.subr.bf16.mxu0 0
  %134 = vmatpush1.bf16.msra.mxu0 %v119
  %135 = vmatprep.subr.bf16.mxu0 0
  %136 = vmatpush1.bf16.msra.mxu0 %v112
  %137 = vmatprep.subr.bf16.mxu0 0
  %138 = vmatpush2.bf16.msra.mxu0 0
  %139 = vmatprep.subr.bf16.mxu0 0
  %140 = vmatpush2.bf16.msra.mxu0 0
  %141 = vmatprep.subr.bf16.mxu0 0
  %142 = vmatpush2.bf16.msra.mxu0 0
  %143 = vmatprep.subr.bf16.mxu0 0
  %144 = vmatpush2.bf16.msra.mxu0 0
  %145 = vmatprep.subr.bf16.mxu0 0
  %146 = vmatpush2.bf16.msra.mxu0 0
  %147 = vmatprep.subr.bf16.mxu0 0
  %148 = vmatpush2.bf16.msra.mxu0 0
  %149 = vmatprep.subr.bf16.mxu0 0
  %150 = vmatpush2.bf16.msra.mxu0 0
  %151 = vmatprep.subr.bf16.mxu0 0
  %152 = vmatpush2.bf16.msra.mxu0 0
  %153 = vmatprep.mubr.bf16.mxu0 0
  %154 = vmatmul.mubr.bf16.gmra.mxu0 %v116
  %v155 = vpop.f32.mrf.mxu0
  %v156 = vadd.f32 0.0, %v155
  %v157 = vpop.f32.mrf.mxu0
  %v158 = vpop.f32.mrf.mxu0
  %v159 = vadd.f32 0.0, %v158
  %v160 = vpop.f32.mrf.mxu0
  %161 = vdwg.mxu0
  %v162 = vpack.c.bf16 %v103, %v100
  %v163 = vpack.c.bf16 %v159, %v156
  %v166 = vunpack.c.l.b16 %v162
  %v167 = vunpack.c.h.b16 %v162
  %v168 = vunpack.c.l.b16 %v163
  %v169 = vunpack.c.h.b16 %v163
  %v170 = vpack.c.b16 %v166, %v166
  %v171 = vpack.c.b16 %v167, %v167
  %v172 = vpack.c.b16 %v168, %v168
  %v173 = vpack.c.b16 %v169, %v169
  %vm178 = vcmask 257024
  %179 = vst.msk [vmem:[%s2] sm:$0xf] %vm178, %v170
  %vm180 = vcmask 253952
  %vm181 = vsmask.f32 256
  %vm182 = vmand %vm180, %vm181
  %v183 = vld [vmem:[%s2 + $0x4] sm:$0x1]
  %v184 = vsel %vm182, %v171, %v183
  %185 = vst [vmem:[%s2 + $0x4] sm:$0x1] %v184
  %186 = vst.msk [vmem:[%s2 + $0x8] sm:$0xf] %vm178, %v172
  %v187 = vld [vmem:[%s2 + $0xc] sm:$0x1]
  %v188 = vsel %vm182, %v173, %v187
  %189 = vst [vmem:[%s2 + $0xc] sm:$0x1] %v188
  // Predicated region
  $region10: #{tpu_custom_call.1} parent=0 // pred_check
    _
  $region11: #{tpu_custom_call.1} parent=0 // pred_check_branch
    %191 = sbr.rel (0) target = $region13
  $region12: #{tpu_custom_call.1} parent=0 // pred_region
    _
  $region13: #{tpu_custom_call.1} parent=0 // pred_fallthru
    _
  // Predicated region
  $region14: #{tpu_custom_call.1} parent=0 // pred_check
    _
  $region15: #{tpu_custom_call.1} parent=0 // pred_check_branch
    %193 = sbr.rel (0) target = $region17
  $region16: #{tpu_custom_call.1} parent=0 // pred_region
    _
  $region17: #{tpu_custom_call.1} parent=0 // pred_fallthru
    _

</llo_original>
